<compile_context>
chip_gen: v6e
topology: v6e:2x2x1
jax: 0.10.0
libtpu: 0.0.40
codegen_flags: <defaults>
</compile_context>

<pallas_src>
import functools

import jax
import jax.numpy as jnp
from jax import lax
from jax.experimental import pallas as pl
from jax.experimental.pallas import tpu as pltpu

EPS_PPO = 1e-5

# Per-input block (f32 elements) for the tiled loss kernel: 256K f32 = 1 MiB.
# 6 inputs x 2 buffers + 2 VMEM accumulators ~= 14 MiB of VMEM.
_DEFAULT_BLOCK_ELEMS = 256 * 1024

# Above this many resident bytes the un-tiled fused full-batch path falls back
# to get_advantages() + tiled ppo_losses() (safe on v5e 16 MiB scoped default
# and v7x 64 MiB physical VMEM).
_FUSED_VMEM_FALLBACK_BYTES = 24 * 1024 * 1024


def _round_up(x, m):
    return (x + m - 1) // m * m


def _slab_shape(m):
    """Sublane-dense layout: (8, M/8) when possible, else (1, M)."""
    if m % 8 == 0:
        return 8, m // 8
    return 1, m


def _as_slab(x, r, c):
    return jnp.reshape(x.astype(jnp.float32), (r, c))


def _newton_recip(x):
    """1/x via EUP approximate reciprocal + one Newton step."""
    r = pl.reciprocal(x, approx=True)
    return r * (2.0 - x * r)


# ----------------------------------------------------------------------------
# Kernel 1: normalized advantages over a sublane-dense (R, C) slab.
#   advantages = returns[:-1] - value_preds[:-1]
#   (advantages - mean) / (std + EPS_PPO)    (torch .std() is unbiased, n-1)
# Two-pass mean/variance (data is VMEM-resident, so the extra pass is cheap
# and avoids catastrophic cancellation of the one-pass formula).
# ----------------------------------------------------------------------------
def _advantage_kernel(returns_ref, values_ref, adv_ref, *, inv_n, inv_nm1):
    d = returns_ref[...] - values_ref[...]                     # (R, C)
    mean = jnp.sum(d, keepdims=True) * inv_n                   # (1, 1)
    c = d - mean
    var = jnp.sum(c * c, keepdims=True) * inv_nm1              # unbiased
    denom = jnp.sqrt(var) + EPS_PPO
    adv_ref[...] = c * _newton_recip(denom)


def get_advantages(returns, value_preds, use_normalized_advantage=True):
    """returns, value_preds: [T+1, N, 1] float32 -> advantages [T, N, 1]."""
    r = returns[:-1, :, 0].astype(jnp.float32)
    v = value_preds[:-1, :, 0].astype(jnp.float32)
    if not use_normalized_advantage:
        return (r - v)[..., None]
    T, N = r.shape
    M = T * N
    R, C = _slab_shape(M)
    kernel = functools.partial(
        _advantage_kernel, inv_n=1.0 / M, inv_nm1=1.0 / max(M - 1, 1)
    )
    adv = pl.pallas_call(
        kernel,
        out_shape=jax.ShapeDtypeStruct((R, C), jnp.float32),
        in_specs=[
            pl.BlockSpec(memory_space=pltpu.VMEM),
            pl.BlockSpec(memory_space=pltpu.VMEM),
        ],
        out_specs=pl.BlockSpec(memory_space=pltpu.VMEM),
    )(r.reshape(R, C), v.reshape(R, C))
    return adv.reshape(T, N, 1)


# ----------------------------------------------------------------------------
# Kernel 2 (fused, num_mini_batch == 1 path): advantage normalization + PPO
# clipped-surrogate + clipped-value loss in a single pallas_call on (R, C)
# sublane-dense slabs.
# ----------------------------------------------------------------------------
def _fused_ppo_kernel(
    returns_ref, vpred_ref, logp_ref, old_logp_ref, values_ref, ent_ref,
    adv_ref, out_ref,
    *, clip_param, value_loss_coef, entropy_coef, use_clipped_value_loss,
    inv_n, inv_nm1,
):
    r = returns_ref[...]                                       # (R, C)
    vp = vpred_ref[...]

    # --- normalized advantages (two-pass mean/var) ---
    d = r - vp
    mean = jnp.sum(d, keepdims=True) * inv_n
    c = d - mean
    var = jnp.sum(c * c, keepdims=True) * inv_nm1
    denom = jnp.sqrt(var) + EPS_PPO
    adv = c * _newton_recip(denom)
    adv_ref[...] = adv

    # --- clipped surrogate ---
    ratio = jnp.exp(logp_ref[...] - old_logp_ref[...])
    surr1 = ratio * adv
    surr2 = jnp.clip(ratio, 1.0 - clip_param, 1.0 + clip_param) * adv
    action_loss = -(jnp.sum(jnp.minimum(surr1, surr2)) * inv_n)

    # --- (clipped) value loss; return_batch == returns[:-1] and
    #     value_preds_batch == value_preds[:-1] in the full-batch path ---
    v = values_ref[...]
    if use_clipped_value_loss:
        vclip = vp + jnp.clip(v - vp, -clip_param, clip_param)
        value_loss = 0.5 * (
            jnp.sum(jnp.maximum((v - r) ** 2, (vclip - r) ** 2)) * inv_n
        )
    else:
        value_loss = 0.5 * (jnp.sum((r - v) ** 2) * inv_n)

    dist_entropy = ent_ref[0]
    out_ref[0] = value_loss
    out_ref[1] = action_loss
    out_ref[2] = (
        value_loss * value_loss_coef + action_loss - dist_entropy * entropy_coef
    )


def ppo_update_full_batch(
    returns, value_preds, action_log_probs, old_action_log_probs, values,
    dist_entropy,
    *, clip_param, value_loss_coef, entropy_coef, use_clipped_value_loss=True,
):
    """Fused num_mini_batch==1 PPO step math.

    returns/value_preds: [T+1, N, 1]; log-probs/values: [T*N, 1]; entropy scalar.
    Returns (advantages [T, N, 1], value_loss, action_loss, total_loss).
    """
    # TODO(synk): the real recurrent_generator may permute the minibatch even
    # for num_mini_batch=1; this fused path assumes identity ordering.
    T1, N, _ = returns.shape
    T = T1 - 1
    M = T * N

    resident_bytes = 7 * 4 * M  # 6 input slabs + adv output, f32, un-tiled
    if resident_bytes > _FUSED_VMEM_FALLBACK_BYTES:
        # TODO(synk): tile get_advantages() too for extreme M (it still holds
        # 3 whole slabs in VMEM); the fallback covers typical large batches.
        adv = get_advantages(returns, value_preds)
        vl, al, tl = ppo_losses(
            action_log_probs, old_action_log_probs, adv.reshape(M, 1),
            values, value_preds[:-1].reshape(M, 1), returns[:-1].reshape(M, 1),
            dist_entropy, clip_param=clip_param,
            value_loss_coef=value_loss_coef, entropy_coef=entropy_coef,
            use_clipped_value_loss=use_clipped_value_loss,
        )
        return adv, vl, al, tl

    R, C = _slab_shape(M)
    kernel = functools.partial(
        _fused_ppo_kernel,
        clip_param=float(clip_param),
        value_loss_coef=float(value_loss_coef),
        entropy_coef=float(entropy_coef),
        use_clipped_value_loss=bool(use_clipped_value_loss),
        inv_n=1.0 / M,
        inv_nm1=1.0 / max(M - 1, 1),
    )
    call_kwargs = {}
    if resident_bytes > (12 << 20):
        call_kwargs["compiler_params"] = pltpu.CompilerParams(
            vmem_limit_bytes=int(resident_bytes + (8 << 20))
        )
    adv, out = pl.pallas_call(
        kernel,
        out_shape=(
            jax.ShapeDtypeStruct((R, C), jnp.float32),
            jax.ShapeDtypeStruct((3,), jnp.float32),
        ),
        in_specs=[pl.BlockSpec(memory_space=pltpu.VMEM)] * 5
        + [pl.BlockSpec(memory_space=pltpu.SMEM)],
        out_specs=(
            pl.BlockSpec(memory_space=pltpu.VMEM),
            pl.BlockSpec(memory_space=pltpu.SMEM),
        ),
        **call_kwargs,
    )(
        _as_slab(returns[:-1], R, C), _as_slab(value_preds[:-1], R, C),
        _as_slab(action_log_probs, R, C), _as_slab(old_action_log_probs, R, C),
        _as_slab(values, R, C),
        jnp.reshape(dist_entropy, (1,)).astype(jnp.float32),
    )
    return adv.reshape(T, N, 1), out[0], out[1], out[2]


# ----------------------------------------------------------------------------
# Kernel 3 (general mini-batch path): PPO loss as a grid-tiled reduction over
# sublane-dense (R, C) slabs.  No host padding: the ragged last block is
# masked in-kernel.  Per-block partial sums accumulate elementwise in VMEM
# vector scratch; one cross-lane reduce + SMEM write in the finalize.
# ----------------------------------------------------------------------------
def _ppo_loss_tiled_kernel(
    logp_ref, old_logp_ref, adv_ref, values_ref, vpred_ref, ret_ref, ent_ref,
    out_ref, acc_a_ref, acc_v_ref,
    *, clip_param, value_loss_coef, entropy_coef, use_clipped_value_loss,
    inv_n, valid_cols, block_cols, needs_mask,
):
    pid = pl.program_id(0)

    @pl.when(pid == 0)
    def _():
        acc_a_ref[...] = jnp.zeros_like(acc_a_ref)
        acc_v_ref[...] = jnp.zeros_like(acc_v_ref)

    ratio = jnp.exp(logp_ref[...] - old_logp_ref[...])
    adv = adv_ref[...]
    surr1 = ratio * adv
    surr2 = jnp.clip(ratio, 1.0 - clip_param, 1.0 + clip_param) * adv
    term_a = jnp.minimum(surr1, surr2)

    v = values_ref[...]
    vp = vpred_ref[...]
    r = ret_ref[...]
    if use_clipped_value_loss:
        vclip = vp + jnp.clip(v - vp, -clip_param, clip_param)
        term_v = jnp.maximum((v - r) ** 2, (vclip - r) ** 2)
    else:
        term_v = (r - v) ** 2

    if needs_mask:
        # Mask out-of-range lanes of the (possibly ragged) last block.
        lane = lax.broadcasted_iota(jnp.int32, term_a.shape, 1)
        valid = (pid * block_cols + lane) < valid_cols
        term_a = jnp.where(valid, term_a, 0.0)
        term_v = jnp.where(valid, term_v, 0.0)

    acc_a_ref[...] = acc_a_ref[...] + term_a      # pure VPU adds per block
    acc_v_ref[...] = acc_v_ref[...] + term_v

    @pl.when(pid == pl.num_programs(0) - 1)
    def _():
        action_loss = -(jnp.sum(acc_a_ref[...]) * inv_n)
        value_loss = 0.5 * (jnp.sum(acc_v_ref[...]) * inv_n)
        out_ref[0] = value_loss
        out_ref[1] = action_loss
        out_ref[2] = (
            value_loss * value_loss_coef
            + action_loss
            - ent_ref[0] * entropy_coef
        )


def ppo_losses(
    action_log_probs, old_action_log_probs, adv_targ,
    values, value_preds_batch, return_batch, dist_entropy,
    *, clip_param, value_loss_coef, entropy_coef, use_clipped_value_loss=True,
    block=None,
):
    """All column inputs are [M, 1] float32; dist_entropy is a scalar.

    Returns (value_loss, action_loss, total_loss) scalars.
    """
    M = int(action_log_probs.shape[0])
    R, C = _slab_shape(M)

    block_elems = _DEFAULT_BLOCK_ELEMS if block is None else int(block)
    cap_cols = max(_round_up(max(block_elems // R, 1), 128), 128)
    if C <= cap_cols:
        block_cols = C          # single full-extent block (exempt from /128)
    else:
        block_cols = cap_cols   # multiple of 128
    grid = (C + block_cols - 1) // block_cols
    needs_mask = (C % block_cols) != 0

    kernel = functools.partial(
        _ppo_loss_tiled_kernel,
        clip_param=float(clip_param),
        value_loss_coef=float(value_loss_coef),
        entropy_coef=float(entropy_coef),
        use_clipped_value_loss=bool(use_clipped_value_loss),
        inv_n=1.0 / M,
        valid_cols=C,
        block_cols=block_cols,
        needs_mask=bool(needs_mask),
    )

    vspec = pl.BlockSpec((R, block_cols), lambda i: (0, i))
    block_bytes = R * block_cols * 4
    # 6 inputs x 2 buffers + 2 accumulators, plus slack.
    vmem_needed = 14 * block_bytes + (1 << 20)
    cp_kwargs = {"dimension_semantics": ("arbitrary",)}
    if vmem_needed > (12 << 20):
        # Raise above v5e's 16 MiB scoped default; stays below v7x physical.
        cp_kwargs["vmem_limit_bytes"] = int(min(vmem_needed + (8 << 20), 48 << 20))

    out = pl.pallas_call(
        kernel,
        out_shape=jax.ShapeDtypeStruct((3,), jnp.float32),
        grid=(grid,),
        in_specs=[vspec] * 6 + [pl.BlockSpec(memory_space=pltpu.SMEM)],
        out_specs=pl.BlockSpec(memory_space=pltpu.SMEM),
        scratch_shapes=[
            pltpu.VMEM((R, block_cols), jnp.float32),
            pltpu.VMEM((R, block_cols), jnp.float32),
        ],
        compiler_params=pltpu.CompilerParams(**cp_kwargs),
    )(
        _as_slab(action_log_probs, R, C), _as_slab(old_action_log_probs, R, C),
        _as_slab(adv_targ, R, C), _as_slab(values, R, C),
        _as_slab(value_preds_batch, R, C), _as_slab(return_batch, R, C),
        jnp.reshape(dist_entropy, (1,)).astype(jnp.float32),
    )
    return out[0], out[1], out[2]


# ----------------------------------------------------------------------------
# Pure-JAX references (verification only)
# ----------------------------------------------------------------------------
def _ref_losses(logp, old_logp, adv, values, vpred_b, ret_b, ent,
                clip_param, vcoef, ecoef, use_clipped_value_loss=True):
    ratio = jnp.exp(logp - old_logp)
    surr1 = ratio * adv
    surr2 = jnp.clip(ratio, 1.0 - clip_param, 1.0 + clip_param) * adv
    action_loss = -jnp.minimum(surr1, surr2).mean()
    if use_clipped_value_loss:
        vclip = vpred_b + jnp.clip(values - vpred_b, -clip_param, clip_param)
        value_loss = 0.5 * jnp.maximum(
            (values - ret_b) ** 2, (vclip - ret_b) ** 2
        ).mean()
    else:
        value_loss = 0.5 * ((ret_b - values) ** 2).mean()
    total = value_loss * vcoef + action_loss - ent * ecoef
    return value_loss, action_loss, total


def _ref_all(returns, value_preds, logp, old_logp, values, vpred_b, ret_b, ent,
             clip_param, vcoef, ecoef):
    d = (returns[:-1] - value_preds[:-1]).reshape(-1)
    mean = d.mean()
    std = jnp.sqrt(jnp.sum((d - mean) ** 2) / (d.size - 1))   # unbiased (n-1)
    adv = ((d - mean) / (std + EPS_PPO)).reshape(-1, 1)
    vl, al, tl = _ref_losses(logp, old_logp, adv, values, vpred_b, ret_b, ent,
                             clip_param, vcoef, ecoef)
    return adv, vl, al, tl


if __name__ == "__main__":
    # Deterministic PPO hyperparameters (module __init__ args).
    clip_param = 0.2
    value_loss_coef = 0.5
    entropy_coef = 0.01

    T, N = 8, 4          # num_steps, num_envs
    M = T * N            # one (full) mini-batch

    key = jax.random.PRNGKey(0)
    ks = jax.random.split(key, 7)
    returns = jax.random.normal(ks[0], (T + 1, N, 1), jnp.float32)
    value_preds = jax.random.normal(ks[1], (T + 1, N, 1), jnp.float32)

    # TODO(synk): actor_critic.evaluate_actions (CNN/RNN policy), backward and
    # the Adam optimizer step are external to this module; log-probs / values /
    # entropy are synthesized here as kernel inputs.
    action_log_probs = -jnp.abs(jax.random.normal(ks[2], (M, 1), jnp.float32))
    old_action_log_probs = -jnp.abs(jax.random.normal(ks[3], (M, 1), jnp.float32))
    values = jax.random.normal(ks[4], (M, 1), jnp.float32)
    return_batch = returns[:-1].reshape(M, 1)
    value_preds_batch = value_preds[:-1].reshape(M, 1)
    dist_entropy = jnp.float32(1.2345)

    # Reference.
    adv_ref, vl_ref, al_ref, tl_ref = _ref_all(
        returns, value_preds, action_log_probs, old_action_log_probs,
        values, value_preds_batch, return_batch, dist_entropy,
        clip_param, value_loss_coef, entropy_coef,
    )

    # ---- Fused path (num_mini_batch == 1): one pallas_call ----
    advantages, value_loss, action_loss, total_loss = ppo_update_full_batch(
        returns, value_preds, action_log_probs, old_action_log_probs, values,
        dist_entropy, clip_param=clip_param, value_loss_coef=value_loss_coef,
        entropy_coef=entropy_coef, use_clipped_value_loss=True,
    )
    jax.block_until_ready((advantages, value_loss, action_loss, total_loss))
    assert jnp.allclose(advantages.reshape(M, 1), adv_ref, atol=1e-5, rtol=1e-5)
    assert jnp.allclose(value_loss, vl_ref, atol=1e-5, rtol=1e-5)
    assert jnp.allclose(action_loss, al_ref, atol=1e-5, rtol=1e-5)
    assert jnp.allclose(total_loss, tl_ref, atol=1e-5, rtol=1e-5)

    # ---- Standalone kernels (general sampled-minibatch path) ----
    adv2 = get_advantages(returns, value_preds)
    vl2, al2, tl2 = ppo_losses(
        action_log_probs, old_action_log_probs, adv2.reshape(M, 1),
        values, value_preds_batch, return_batch, dist_entropy,
        clip_param=clip_param, value_loss_coef=value_loss_coef,
        entropy_coef=entropy_coef, use_clipped_value_loss=True,
    )
    jax.block_until_ready((adv2, vl2, al2, tl2))
    assert jnp.allclose(adv2.reshape(M, 1), adv_ref, atol=1e-5, rtol=1e-5)
    assert jnp.allclose(vl2, vl_ref, atol=1e-5, rtol=1e-5)
    assert jnp.allclose(al2, al_ref, atol=1e-5, rtol=1e-5)
    assert jnp.allclose(tl2, tl_ref, atol=1e-5, rtol=1e-5)

    # ---- Multi-block tiled reduction, (8, C) layout, ragged last block ----
    M2 = 8000
    kk = jax.random.split(jax.random.PRNGKey(1), 6)
    logp2 = -jnp.abs(jax.random.normal(kk[0], (M2, 1), jnp.float32))
    old2 = -jnp.abs(jax.random.normal(kk[1], (M2, 1), jnp.float32))
    adv_t2 = jax.random.normal(kk[2], (M2, 1), jnp.float32)
    val2 = jax.random.normal(kk[3], (M2, 1), jnp.float32)
    vp2 = jax.random.normal(kk[4], (M2, 1), jnp.float32)
    ret2 = jax.random.normal(kk[5], (M2, 1), jnp.float32)
    vl3, al3, tl3 = ppo_losses(
        logp2, old2, adv_t2, val2, vp2, ret2, dist_entropy,
        clip_param=clip_param, value_loss_coef=value_loss_coef,
        entropy_coef=entropy_coef, use_clipped_value_loss=True, block=2048,
    )
    jax.block_until_ready((vl3, al3, tl3))
    vl3_ref, al3_ref, tl3_ref = _ref_losses(
        logp2, old2, adv_t2, val2, vp2, ret2, dist_entropy,
        clip_param, value_loss_coef, entropy_coef,
    )
    assert jnp.allclose(vl3, vl3_ref, atol=1e-5, rtol=1e-4)
    assert jnp.allclose(al3, al3_ref, atol=1e-5, rtol=1e-4)
    assert jnp.allclose(tl3, tl3_ref, atol=1e-5, rtol=1e-4)

    # ---- (1, M) fallback layout (M % 8 != 0), ragged last block ----
    M3 = 1003
    kk3 = jax.random.split(jax.random.PRNGKey(2), 6)
    logp3 = -jnp.abs(jax.random.normal(kk3[0], (M3, 1), jnp.float32))
    old3 = -jnp.abs(jax.random.normal(kk3[1], (M3, 1), jnp.float32))
    adv_t3 = jax.random.normal(kk3[2], (M3, 1), jnp.float32)
    val3 = jax.random.normal(kk3[3], (M3, 1), jnp.float32)
    vp3 = jax.random.normal(kk3[4], (M3, 1), jnp.float32)
    ret3 = jax.random.normal(kk3[5], (M3, 1), jnp.float32)
    vl4, al4, tl4 = ppo_losses(
        logp3, old3, adv_t3, val3, vp3, ret3, dist_entropy,
        clip_param=clip_param, value_loss_coef=value_loss_coef,
        entropy_coef=entropy_coef, use_clipped_value_loss=True, block=384,
    )
    jax.block_until_ready((vl4, al4, tl4))
    vl4_ref, al4_ref, tl4_ref = _ref_losses(
        logp3, old3, adv_t3, val3, vp3, ret3, dist_entropy,
        clip_param, value_loss_coef, entropy_coef,
    )
    assert jnp.allclose(vl4, vl4_ref, atol=1e-5, rtol=1e-4)
    assert jnp.allclose(al4, al4_ref, atol=1e-5, rtol=1e-4)
    assert jnp.allclose(tl4, tl4_ref, atol=1e-5, rtol=1e-4)

    print("KERNEL_OK")
</pallas_src>

<mosaic_0001>
module attributes {stable_mosaic.version = 11 : i64} {
  func.func @_fused_ppo_kernel(%arg0: memref<8x4xf32, #tpu.memory_space<vmem>>, %arg1: memref<8x4xf32, #tpu.memory_space<vmem>>, %arg2: memref<8x4xf32, #tpu.memory_space<vmem>>, %arg3: memref<8x4xf32, #tpu.memory_space<vmem>>, %arg4: memref<8x4xf32, #tpu.memory_space<vmem>>, %arg5: memref<1xf32, #tpu.memory_space<smem>>, %arg6: memref<8x4xf32, #tpu.memory_space<vmem>>, %arg7: memref<3xf32, #tpu.memory_space<smem>>) attributes {dimension_semantics = [], scalar_prefetch = 0 : i64, scratch_operands = 0 : i64, tpu.core_type = #tpu.core_type<tc>} {
    %c0 = arith.constant 0 : index
    %c0_0 = arith.constant 0 : index
    %0 = vector.load %arg0[%c0, %c0_0] : memref<8x4xf32, #tpu.memory_space<vmem>>, vector<8x4xf32>
    %c0_1 = arith.constant 0 : index
    %c0_2 = arith.constant 0 : index
    %1 = vector.load %arg1[%c0_1, %c0_2] : memref<8x4xf32, #tpu.memory_space<vmem>>, vector<8x4xf32>
    %2 = arith.subf %0, %1 : vector<8x4xf32>
    %3 = vector.shape_cast %2 : vector<8x4xf32> to vector<1x8x4xf32>
    %cst = arith.constant dense<0.000000e+00> : vector<1xf32>
    %4 = vector.multi_reduction <add>, %3, %cst [1, 2] : vector<1x8x4xf32> to vector<1xf32>
    %5 = vector.shape_cast %4 : vector<1xf32> to vector<1x1x1xf32>
    %6 = vector.extract %5[0, 0, 0] : f32 from vector<1x1x1xf32>
    %7 = vector.broadcast %6 : f32 to vector<1x1xf32>
    %cst_3 = arith.constant 3.125000e-02 : f32
    %8 = vector.broadcast %cst_3 : f32 to vector<1x1xf32>
    %9 = arith.mulf %7, %8 : vector<1x1xf32>
    %10 = vector.broadcast %9 : vector<1x1xf32> to vector<8x4xf32>
    %11 = arith.subf %2, %10 : vector<8x4xf32>
    %12 = arith.mulf %11, %11 : vector<8x4xf32>
    %13 = vector.shape_cast %12 : vector<8x4xf32> to vector<1x8x4xf32>
    %cst_4 = arith.constant dense<0.000000e+00> : vector<1xf32>
    %14 = vector.multi_reduction <add>, %13, %cst_4 [1, 2] : vector<1x8x4xf32> to vector<1xf32>
    %15 = vector.shape_cast %14 : vector<1xf32> to vector<1x1x1xf32>
    %16 = vector.extract %15[0, 0, 0] : f32 from vector<1x1x1xf32>
    %17 = vector.broadcast %16 : f32 to vector<1x1xf32>
    %cst_5 = arith.constant 0.0322580636 : f32
    %18 = vector.broadcast %cst_5 : f32 to vector<1x1xf32>
    %19 = arith.mulf %17, %18 : vector<1x1xf32>
    %20 = math.sqrt %19 : vector<1x1xf32>
    %cst_6 = arith.constant 9.99999974E-6 : f32
    %21 = vector.broadcast %cst_6 : f32 to vector<1x1xf32>
    %22 = arith.addf %20, %21 : vector<1x1xf32>
    %23 = tpu.reciprocal %22 {approx = true} : vector<1x1xf32> -> vector<1x1xf32>
    %24 = arith.mulf %22, %23 : vector<1x1xf32>
    %cst_7 = arith.constant 2.000000e+00 : f32
    %25 = vector.broadcast %cst_7 : f32 to vector<1x1xf32>
    %26 = arith.subf %25, %24 : vector<1x1xf32>
    %27 = arith.mulf %23, %26 : vector<1x1xf32>
    %28 = vector.broadcast %27 : vector<1x1xf32> to vector<8x4xf32>
    %29 = arith.mulf %11, %28 : vector<8x4xf32>
    %c0_8 = arith.constant 0 : index
    %c0_9 = arith.constant 0 : index
    %30 = vector.load %arg6[%c0_8, %c0_9] : memref<8x4xf32, #tpu.memory_space<vmem>>, vector<8x4xf32>
    tpu.vector_store %arg6[%c0_8, %c0_9], %29 {strides = array<i32>} : memref<8x4xf32, #tpu.memory_space<vmem>>, vector<8x4xf32>,
    %c0_10 = arith.constant 0 : index
    %c0_11 = arith.constant 0 : index
    %31 = vector.load %arg2[%c0_10, %c0_11] : memref<8x4xf32, #tpu.memory_space<vmem>>, vector<8x4xf32>
    %c0_12 = arith.constant 0 : index
    %c0_13 = arith.constant 0 : index
    %32 = vector.load %arg3[%c0_12, %c0_13] : memref<8x4xf32, #tpu.memory_space<vmem>>, vector<8x4xf32>
    %33 = arith.subf %31, %32 : vector<8x4xf32>
    %34 = math.exp %33 : vector<8x4xf32>
    %35 = arith.mulf %34, %29 : vector<8x4xf32>
    %cst_14 = arith.constant 8.000000e-01 : f32
    %cst_15 = arith.constant 1.200000e+00 : f32
    %36 = vector.broadcast %cst_14 : f32 to vector<8x4xf32>
    %37 = arith.maximumf %36, %34 : vector<8x4xf32>
    %38 = vector.broadcast %cst_15 : f32 to vector<8x4xf32>
    %39 = arith.minimumf %38, %37 : vector<8x4xf32>
    %40 = arith.mulf %39, %29 : vector<8x4xf32>
    %41 = arith.minimumf %35, %40 : vector<8x4xf32>
    %42 = vector.shape_cast %41 : vector<8x4xf32> to vector<1x8x4xf32>
    %cst_16 = arith.constant dense<0.000000e+00> : vector<1xf32>
    %43 = vector.multi_reduction <add>, %42, %cst_16 [1, 2] : vector<1x8x4xf32> to vector<1xf32>
    %44 = vector.shape_cast %43 : vector<1xf32> to vector<1x1x1xf32>
    %45 = vector.extract %44[0, 0, 0] : f32 from vector<1x1x1xf32>
    %cst_17 = arith.constant 3.125000e-02 : f32
    %46 = arith.mulf %45, %cst_17 : f32
    %cst_18 = arith.constant 0.000000e+00 : f32
    %47 = arith.subf %cst_18, %46 : f32
    %c0_19 = arith.constant 0 : index
    %c0_20 = arith.constant 0 : index
    %48 = vector.load %arg4[%c0_19, %c0_20] : memref<8x4xf32, #tpu.memory_space<vmem>>, vector<8x4xf32>
    %49 = arith.subf %48, %1 : vector<8x4xf32>
    %cst_21 = arith.constant -2.000000e-01 : f32
    %cst_22 = arith.constant 2.000000e-01 : f32
    %50 = vector.broadcast %cst_21 : f32 to vector<8x4xf32>
    %51 = arith.maximumf %50, %49 : vector<8x4xf32>
    %52 = vector.broadcast %cst_22 : f32 to vector<8x4xf32>
    %53 = arith.minimumf %52, %51 : vector<8x4xf32>
    %54 = arith.addf %1, %53 : vector<8x4xf32>
    %55 = arith.subf %48, %0 : vector<8x4xf32>
    %56 = arith.mulf %55, %55 : vector<8x4xf32>
    %57 = arith.subf %54, %0 : vector<8x4xf32>
    %58 = arith.mulf %57, %57 : vector<8x4xf32>
    %59 = arith.maximumf %56, %58 : vector<8x4xf32>
    %60 = vector.shape_cast %59 : vector<8x4xf32> to vector<1x8x4xf32>
    %cst_23 = arith.constant dense<0.000000e+00> : vector<1xf32>
    %61 = vector.multi_reduction <add>, %60, %cst_23 [1, 2] : vector<1x8x4xf32> to vector<1xf32>
    %62 = vector.shape_cast %61 : vector<1xf32> to vector<1x1x1xf32>
    %63 = vector.extract %62[0, 0, 0] : f32 from vector<1x1x1xf32>
    %cst_24 = arith.constant 3.125000e-02 : f32
    %64 = arith.mulf %63, %cst_24 : f32
    %cst_25 = arith.constant 5.000000e-01 : f32
    %65 = arith.mulf %cst_25, %64 : f32
    %c0_26 = arith.constant 0 : index
    %66 = memref.load %arg5[%c0_26] : memref<1xf32, #tpu.memory_space<smem>>
    %c0_27 = arith.constant 0 : index
    %67 = memref.load %arg7[%c0_27] : memref<3xf32, #tpu.memory_space<smem>>
    memref.store %65, %arg7[%c0_27] : memref<3xf32, #tpu.memory_space<smem>>
    %c1 = arith.constant 1 : index
    %68 = memref.load %arg7[%c1] : memref<3xf32, #tpu.memory_space<smem>>
    memref.store %47, %arg7[%c1] : memref<3xf32, #tpu.memory_space<smem>>
    %cst_28 = arith.constant 5.000000e-01 : f32
    %69 = arith.mulf %65, %cst_28 : f32
    %70 = arith.addf %69, %47 : f32
    %cst_29 = arith.constant 0.00999999977 : f32
    %71 = arith.mulf %66, %cst_29 : f32
    %72 = arith.subf %70, %71 : f32
    %c2 = arith.constant 2 : index
    %73 = memref.load %arg7[%c2] : memref<3xf32, #tpu.memory_space<smem>>
    memref.store %72, %arg7[%c2] : memref<3xf32, #tpu.memory_space<smem>>
    return
  }
}

</mosaic_0001>

<llo_original>
// kernel: tpu_custom_call.1
$region0: #{tpu_custom_call.1}
  #allocation0 [shape = 'u32[]', space=smem, size = 0x4, offset = 0x4, fixed_abs, tag = 'smem constant byte address 0x4 - core index']
  #allocation1 [shape = 'u32[144,128]{1,0:T(1,128)}', space=vmem, size = 0x12000, scoped, tag = 'internal scratch']
  #allocation2 [shape = 'f32[1]{0:T(128)S(6)}', space=smem, size = 0x200, scoped, tag = 'scoped memory for tpu_custom_call.1']
  %s0 = inlined_call_operand.vmem [shape: f32[8,4], index: 0, kind: input, shape index: {}]
  %s1 = inlined_call_operand.vmem [shape: f32[8,4], index: 1, kind: input, shape index: {}]
  %s2 = inlined_call_operand.vmem [shape: f32[8,4], index: 2, kind: input, shape index: {}]
  %s3 = inlined_call_operand.vmem [shape: f32[8,4], index: 3, kind: input, shape index: {}]
  %s4 = inlined_call_operand.vmem [shape: f32[8,4], index: 4, kind: input, shape index: {}]
  %s5 = inlined_call_operand.<no memory space> [shape: f32[1], index: 5, kind: input, shape index: {}]
  %s6 = inlined_call_operand.vmem [shape: f32[8,4], index: 6, kind: output, shape index: {0}]
  %s7 = inlined_call_operand.hbm [shape: f32[3], index: 7, kind: output, shape index: {1}]
  %8 = xla_tuple %s6, %s7
  %s9 = sld [smem:[#allocation0]]
  $region42: #{tpu_custom_call.1} parent=0
    _
  %s11 = ssub.s32 1, %s9
  %s12 = scalar_select 0, %s11, %s9
  %13 = sst [smem:[#allocation2]] %s5
  $region1: #{tpu_custom_call.1} parent=0
    #allocation3 [shape = 'u8[512]{0}', space=smem, size = 0x200, scoped, tag = 'output window, operand 1, single buffered']
    #allocation4 [shape = 's32[1]{0}', space=sflag, size = 0x4, scoped, tag = 'scoped memory for tpu_custom_call.1']
    %14 = vsyncpa [#allocation4], 0
    // Predicated region
    $region2: #{tpu_custom_call.1} parent=1 // pred_check
      _
    $region3: #{tpu_custom_call.1} parent=1 // pred_check_branch
      %16 = sbr.rel (0) target = $region5
    $region4: #{tpu_custom_call.1} parent=1 // pred_region
      _
    $region5: #{tpu_custom_call.1} parent=1 // pred_fallthru
      _
    // Predicated region
    $region6: #{tpu_custom_call.1} parent=1 // pred_check
      _
    $region7: #{tpu_custom_call.1} parent=1 // pred_check_branch
      %18 = sbr.rel (0) target = $region9
    $region8: #{tpu_custom_call.1} parent=1 // pred_region
      _
    $region9: #{tpu_custom_call.1} parent=1 // pred_fallthru
      _
    // Predicated region
    $region10: #{tpu_custom_call.1} parent=1 // pred_check
      _
    $region11: #{tpu_custom_call.1} parent=1 // pred_check_branch
      %20 = sbr.rel (0) target = $region13
    $region12: #{tpu_custom_call.1} parent=1 // pred_region
      _
    $region13: #{tpu_custom_call.1} parent=1 // pred_fallthru
      _
    // Predicated region
    $region14: #{tpu_custom_call.1} parent=1 // pred_check
      _
    $region15: #{tpu_custom_call.1} parent=1 // pred_check_branch
      %22 = sbr.rel (0) target = $region17
    $region16: #{tpu_custom_call.1} parent=1 // pred_region
      _
    $region17: #{tpu_custom_call.1} parent=1 // pred_fallthru
      _
    // Predicated region
    $region18: #{tpu_custom_call.1} parent=1 // pred_check
      _
    $region19: #{tpu_custom_call.1} parent=1 // pred_check_branch
      %24 = sbr.rel (0) target = $region21
    $region20: #{tpu_custom_call.1} parent=1 // pred_region
      _
    $region21: #{tpu_custom_call.1} parent=1 // pred_fallthru
      _
    // Predicated region
    $region22: #{tpu_custom_call.1} parent=1 // pred_check
      _
    $region23: #{tpu_custom_call.1} parent=1 // pred_check_branch
      %26 = sbr.rel (0) target = $region25
    $region24: #{tpu_custom_call.1} parent=1 // pred_region
      _
    $region25: #{tpu_custom_call.1} parent=1 // pred_fallthru
      _
    %v27 = vld [vmem:[%s0] sm:$0xff]
    %v28 = vld [vmem:[%s1] sm:$0xff]
    %v29 = vsub.f32 %v27, %v28
    %vm30 = vcmask 31744
    %v31 = vsel %vm30, %v29, 0.0
    %32 = vadd.xlane.f32.xlu0 %v31
    %v33 = vpop.xlane.xlu0 %32
    %v34 = vrot.slane %v33, 4
    %v35 = vadd.f32 %v33, %v34
    %v36 = vrot.slane %v35, 2
    %v37 = vadd.f32 %v35, %v36
    %v38 = vrot.slane %v37, 1
    %v39 = vadd.f32 %v37, %v38
    %s40 = vtos %v39
    %v41 = vstv %s40
    %v42 = vmul.f32 %v41, 0.03125
    %v43 = vsub.f32 %v29, %v42
    %v44 = vmul.f32 %v43, %v43
    %v45 = vsel %vm30, %v44, 0.0
    %46 = vadd.xlane.f32.xlu0 %v45
    %v47 = vpop.xlane.xlu0 %46
    %v48 = vrot.slane %v47, 4
    %v49 = vadd.f32 %v47, %v48
    %v50 = vrot.slane %v49, 2
    %v51 = vadd.f32 %v49, %v50
    %v52 = vrot.slane %v51, 1
    %v53 = vadd.f32 %v51, %v52
    %s54 = vtos %v53
    %v55 = vstv %s54
    %v56 = vmul.f32 %v55, 0.032258064
    %v57 = vrsqrt.pop %v56
    %v58 = vmul.f32 %v56, %v57
    %vm59 = vcmp.eq.f32.partialorder %v56, inf
    %v60 = vsel %vm59, %v56, %v58
    %vm61 = vcmp.eq.f32.partialorder %v56, 0.0
    %v62 = vand.u32 %v56, 2147483648
    %v63 = vsel %vm61, %v62, %v60
    %v64 = vadd.f32 %v63, 1e-05
    %v65 = vrcp.pop %v64
    %v66 = vmul.f32 %v64, %v65
    %v67 = vsub.f32 2.0, %v66
    %v68 = vmul.f32 %v65, %v67
    %v69 = vmul.f32 %v43, %v68
    %70 = vst.msk [vmem:[%s6] sm:$0xff] %vm30, %v69
    %v71 = vld [vmem:[%s2] sm:$0xff]
    %v72 = vld [vmem:[%s3] sm:$0xff]
    %v73 = vsub.f32 %v71, %v72
    %v74 = vmul.f32 %v73, 1.442695
    %v75 = vpow.pop %v74
    %v76 = vmul.f32 %v75, %v69
    %v77 = vmax.f32 %v75, 0.8
    %v78 = vmin.f32 %v77, 1.2
    %v79 = vmul.f32 %v78, %v69
    %v80 = vmin.f32 %v76, %v79
    %v81 = vsel %vm30, %v80, 0.0
    %82 = vadd.xlane.f32.xlu0 %v81
    %v83 = vpop.xlane.xlu0 %82
    %v84 = vrot.slane %v83, 4
    %v85 = vadd.f32 %v83, %v84
    %v86 = vrot.slane %v85, 2
    %v87 = vadd.f32 %v85, %v86
    %v88 = vrot.slane %v87, 1
    %v89 = vadd.f32 %v87, %v88
    %s90 = vtos %v89
    %s91 = smul.f32 %s90, 0.03125
    %s92 = ssub.f32 0.0, %s91
    %v93 = vld [vmem:[%s4] sm:$0xff]
    %v94 = vsub.f32 %v93, %v28
    %v95 = vmax.f32 %v94, -0.2
    %v96 = vmin.f32 %v95, 0.2
    %v97 = vadd.f32 %v28, %v96
    %v98 = vsub.f32 %v93, %v27
    %v99 = vmul.f32 %v98, %v98
    %v100 = vsub.f32 %v97, %v27
    %v101 = vmul.f32 %v100, %v100
    %v102 = vmax.f32 %v99, %v101
    %v103 = vsel %vm30, %v102, 0.0
    %104 = vadd.xlane.f32.xlu0 %v103
    %v105 = vpop.xlane.xlu0 %104
    %v106 = vrot.slane %v105, 4
    %v107 = vadd.f32 %v105, %v106
    %v108 = vrot.slane %v107, 2
    %v109 = vadd.f32 %v107, %v108
    %v110 = vrot.slane %v109, 1
    %v111 = vadd.f32 %v109, %v110
    %s112 = vtos %v111
    %s113 = smul.f32 %s112, 0.03125
    %s114 = smul.f32 %s113, 0.5
    %s115 = sld [smem:[#allocation2]]
    %s116 = scalar_lea.smem [#allocation3], 0
    %117 = sst [smem:[%s116]] %s114
    %s118 = scalar_lea.smem [#allocation3], 1
    %119 = sst [smem:[%s118]] %s92
    %s120 = smul.f32 %s114, 0.5
    %s121 = sadd.f32 %s120, %s92
    %s122 = smul.f32 %s115, 0.01
    %s123 = ssub.f32 %s121, %s122
    %s124 = scalar_lea.smem [#allocation3], 2
    %125 = sst [smem:[%s124]] %s123
    // Predicated region
    $region26: #{tpu_custom_call.1} parent=1 // pred_check
      _
    $region27: #{tpu_custom_call.1} parent=1 // pred_check_branch
      %127 = sbr.rel (0) target = $region29
    $region28: #{tpu_custom_call.1} parent=1 // pred_region
      _
    $region29: #{tpu_custom_call.1} parent=1 // pred_fallthru
      _
    // Predicated region
    $region30: #{tpu_custom_call.1} parent=1 // pred_check
      _
    $region31: #{tpu_custom_call.1} parent=1 // pred_check_branch
      %129 = sbr.rel (0) target = $region33
    $region32: #{tpu_custom_call.1} parent=1 // pred_region
      %s131 = ssub.s32 16, 16
      %132 = vsyncadd [#allocation4], %s131
      %135 = dma.smem_to_hbm [#allocation3], 16, %s7, [#allocation4]
    $region33: #{tpu_custom_call.1} parent=1 // pred_fallthru
      _
    // Predicated region
    $region34: #{tpu_custom_call.1} parent=1 // pred_check
      _
    $region35: #{tpu_custom_call.1} parent=1 // pred_check_branch
      %137 = sbr.rel (0) target = $region37
    $region36: #{tpu_custom_call.1} parent=1 // pred_region
      _
    $region37: #{tpu_custom_call.1} parent=1 // pred_fallthru
      _
    // Predicated region
    $region38: #{tpu_custom_call.1} parent=1 // pred_check
      _
    $region39: #{tpu_custom_call.1} parent=1 // pred_check_branch
      %139 = sbr.rel (0) target = $region41
    $region40: #{tpu_custom_call.1} parent=1 // pred_region
      %140 = dma.done [#allocation4], 16
    $region41: #{tpu_custom_call.1} parent=1 // pred_fallthru
      _
    %141 = sfence
    %142 = vsyncpa [#allocation4], 1

</llo_original>
